<compile_context>
chip_gen: v7x
topology: tpu7x:2x2x1
jax: 0.10.0
libtpu: 0.0.40
codegen_flags: <defaults>
</compile_context>

<pallas_src>
import jax
import jax.numpy as jnp
from jax.experimental import pallas as pl
from jax.experimental.pallas import tpu as pltpu


# ------------------------------- kernels -----------------------------------


def _linear_relu_kernel(x_ref, w_ref, b_ref, o_ref, acc_ref):
    """y = relu(x @ Wt + b), K-tiled with an f32 VMEM accumulator."""
    k = pl.program_id(2)

    @pl.when(k == 0)
    def _():
        acc_ref[...] = jnp.zeros_like(acc_ref)

    acc_ref[...] += jnp.dot(x_ref[...], w_ref[...],
                            preferred_element_type=jnp.float32)

    @pl.when(k == pl.num_programs(2) - 1)
    def _():
        o_ref[...] = jnp.maximum(acc_ref[...] + b_ref[...], 0.0).astype(o_ref.dtype)


def _linear_relu_kernel_1k(x_ref, w_ref, b_ref, o_ref):
    """Single-K-step variant: no scratch accumulator, write out directly."""
    acc = jnp.dot(x_ref[...], w_ref[...], preferred_element_type=jnp.float32)
    o_ref[...] = jnp.maximum(acc + b_ref[...], 0.0).astype(o_ref.dtype)


def _res_skip_kernel(ws_ref, x_ref, w_ref, b_ref, xs_ref, o_ref, acc_ref):
    """out = ws * xs + relu(x @ Wt + b), K-tiled.

    xs is the pre-shaped skip source (x, wrapper pair-sum, or [x, x] either
    materialized or via a wrapping index_map), blocked like the output tile.
    """
    k = pl.program_id(2)

    @pl.when(k == 0)
    def _():
        acc_ref[...] = jnp.zeros_like(acc_ref)

    acc_ref[...] += jnp.dot(x_ref[...], w_ref[...],
                            preferred_element_type=jnp.float32)

    @pl.when(k == pl.num_programs(2) - 1)
    def _():
        y = jnp.maximum(acc_ref[...] + b_ref[...], 0.0)
        skip = ws_ref[0] * xs_ref[...].astype(jnp.float32)
        o_ref[...] = (skip + y).astype(o_ref.dtype)


def _res_skip_kernel_1k(ws_ref, x_ref, w_ref, b_ref, xs_ref, o_ref):
    acc = jnp.dot(x_ref[...], w_ref[...], preferred_element_type=jnp.float32)
    y = jnp.maximum(acc + b_ref[...], 0.0)
    skip = ws_ref[0] * xs_ref[...].astype(jnp.float32)
    o_ref[...] = (skip + y).astype(o_ref.dtype)


# ------------------------------- wrapper ------------------------------------


def _round_up(n, m):
    return ((n + m - 1) // m) * m


def _pad2(a, rows, cols):
    pr, pc = rows - a.shape[0], cols - a.shape[1]
    if pr == 0 and pc == 0:
        return a
    return jnp.pad(a, ((0, pr), (0, pc)))


def _vmem_limit_bytes():
    # v5e/v6e: 128 MiB physical -> ~96 MiB budget; v7x: 64 MiB -> 48 MiB.
    try:
        cap = int(pltpu.get_tpu_info().vmem_capacity_bytes)
    except Exception:
        cap = 64 * 1024 * 1024
    return int(min(cap * 3 // 4, 100 * 1024 * 1024))


def residue_module_dense(x, weight, bias, weight_skip=None, resnet=False, *,
                         block_b=512, block_n=512, block_k=None,
                         compute_dtype=jnp.bfloat16):
    """Forward pass of _ResidueModuleDense.

    x:           (B, size_in)
    weight:      (size_out, size_in)   (PyTorch nn.Linear layout)
    bias:        (size_out,)
    weight_skip: (1,) or None
    compute_dtype: dtype of the matmul operands (default bf16 -> native MXU
                   path on v5e/v6e/v7x); accumulation + epilogue stay f32.
                   Pass jnp.float32 for f32-exact parity.
    """
    B, size_in = x.shape
    size_out, size_in_w = weight.shape
    assert size_in_w == size_in
    out_dtype = x.dtype
    mm_dtype = jnp.dtype(compute_dtype) if compute_dtype is not None else jnp.dtype(x.dtype)

    # ---- tile sizes (lane-dense N, batch aligned to packed-sublane pitch) ---
    sub = 8 * (4 // max(1, mm_dtype.itemsize))      # 8 f32 / 16 bf16 / 32 8-bit
    if block_k is None:
        # Full-K residency threshold (keeps tiles within the v7x VMEM budget).
        block_k = 4096 if mm_dtype.itemsize <= 2 else 2048

    tile_b = min(block_b, _round_up(B, sub))
    Bp = _round_up(B, tile_b)
    tile_n = min(block_n, _round_up(size_out, 128))
    Np = _round_up(_round_up(size_out, 128), tile_n)
    tile_k = min(block_k, _round_up(size_in, 128))
    Kp = _round_up(_round_up(size_in, 128), tile_k)

    # Give the two "parallel" grid axes >= 2 total steps when possible so that
    # v7x's 2 TensorCores both get work (a (1,1,k) grid idles one core).
    if (Bp // tile_b) * (Np // tile_n) < 2:
        if tile_b % (2 * sub) == 0:
            tile_b //= 2
            Bp = _round_up(B, tile_b)
        elif tile_n % 256 == 0:
            tile_n //= 2
            Np = _round_up(_round_up(size_out, 128), tile_n)

    n_k = Kp // tile_k
    grid = (Bp // tile_b, Np // tile_n, n_k)

    # ---- operands -----------------------------------------------------------
    # Weight is transposed ONCE here so every tile is a canonical [M,K]x[K,N]
    # MXU matmul (no risk of per-tile XLU transposes of the W block).
    x_mm = _pad2(x, Bp, Kp).astype(mm_dtype)                        # (Bp, Kp)
    w_t = _pad2(weight.T, Kp, Np).astype(mm_dtype)                  # (Kp, Np)
    b_p = _pad2(bias.reshape(1, size_out).astype(jnp.float32), 1, Np)

    x_spec = pl.BlockSpec((tile_b, tile_k), lambda i, j, k: (i, k))
    w_spec = pl.BlockSpec((tile_k, tile_n), lambda i, j, k: (k, j))
    b_spec = pl.BlockSpec((1, tile_n), lambda i, j, k: (0, j))
    o_spec = pl.BlockSpec((tile_b, tile_n), lambda i, j, k: (i, j))
    ws_spec = pl.BlockSpec(memory_space=pltpu.MemorySpace.SMEM)
    out_shape = jax.ShapeDtypeStruct((Bp, Np), out_dtype)
    scratch = [] if n_k == 1 else [pltpu.VMEM((tile_b, tile_n), jnp.float32)]
    cparams = pltpu.CompilerParams(
        dimension_semantics=("parallel", "parallel", "arbitrary"),
        vmem_limit_bytes=_vmem_limit_bytes())

    def call_plain():
        kernel = _linear_relu_kernel_1k if n_k == 1 else _linear_relu_kernel
        out = pl.pallas_call(
            kernel,
            out_shape=out_shape,
            grid=grid,
            in_specs=[x_spec, w_spec, b_spec],
            out_specs=o_spec,
            scratch_shapes=scratch,
            compiler_params=cparams,
        )(x_mm, w_t, b_p)
        return out[:B, :size_out]

    if not resnet:
        return call_plain()

    ws = jnp.asarray(weight_skip, dtype=jnp.float32).reshape(1)

    # Skip source xs: kept in the INPUT dtype in HBM (upcast per-tile in the
    # epilogue), blocked like the output tile.
    xs = None
    xs_spec = pl.BlockSpec((tile_b, tile_n), lambda i, j, k: (i, j))
    if size_out == size_in:
        xs = _pad2(x, Bp, Np)
    elif 2 * size_out == size_in:
        # Pair-sum skip computed in the wrapper (one cheap mem-bound XLA op);
        # the 0.5 factor is folded into the scalar skip weight.
        xs = _pad2(x.reshape(B, size_out, 2).sum(axis=2).astype(x.dtype), Bp, Np)
        ws = ws * 0.5
    elif size_out == 2 * size_in:
        if size_in % tile_n == 0:
            # Duplicate skip without materializing [x, x] in HBM: wrap the
            # output column-tile index back onto x's column tiles.
            n_xb = size_in // tile_n
            xs = _pad2(x, Bp, size_in)
            xs_spec = pl.BlockSpec((tile_b, tile_n),
                                   lambda i, j, k: (i, j % n_xb))
        else:
            xs = _pad2(jnp.concatenate([x, x], axis=1), Bp, Np)

    if xs is None:
        # PyTorch fall-through: warn, return act(linear(x)).
        # TODO(synk): this is a trace-time print, not a per-call runtime warning.
        print("the dimensions don't match for resNet module")
        return call_plain()

    kernel = _res_skip_kernel_1k if n_k == 1 else _res_skip_kernel
    out = pl.pallas_call(
        kernel,
        out_shape=out_shape,
        grid=grid,
        in_specs=[ws_spec, x_spec, w_spec, b_spec, xs_spec],
        out_specs=o_spec,
        scratch_shapes=scratch,
        compiler_params=cparams,
    )(ws, x_mm, w_t, b_p, xs)
    return out[:B, :size_out]


# ------------------------------- reference ----------------------------------


def ref_forward(x, weight, bias, weight_skip, resnet):
    size_in = x.shape[1]
    size_out = weight.shape[0]
    y = jax.nn.relu(x @ weight.T + bias)
    if not resnet:
        return y
    ws = jnp.asarray(weight_skip, dtype=jnp.float32).reshape(1)
    if size_out == size_in:
        return ws * x + y
    if 2 * size_out == size_in:
        return ws * 0.5 * x.reshape(x.shape[0], -1, 2).sum(axis=2) + y
    if size_out == 2 * size_in:
        return ws * jnp.concatenate([x, x], axis=1) + y
    return y


# --------------------------------- main --------------------------------------


def _init_params(key, size_in, size_out):
    # Mirrors torch.nn.Linear default init: U(-1/sqrt(in), 1/sqrt(in))
    kw, kb = jax.random.split(key)
    bound = 1.0 / (size_in ** 0.5)
    w = jax.random.uniform(kw, (size_out, size_in), jnp.float32, -bound, bound)
    b = jax.random.uniform(kb, (size_out,), jnp.float32, -bound, bound)
    w_skip = jnp.ones((1,), jnp.float32)   # torch.ones(1)
    return w, b, w_skip


if __name__ == "__main__":
    key = jax.random.PRNGKey(0)
    kx, kp = jax.random.split(key)
    ok = True

    # (batch, size_in, size_out, resNet, extra kwargs):
    #   plain, identity skip, pair-sum skip, 2x skip (concat fallback),
    #   ragged batch, and 2x skip via the wrapping (no-concat) index_map.
    configs = [
        (16, 32, 48, False, {}),
        (16, 32, 32, True, {}),
        (16, 32, 16, True, {}),
        (16, 32, 64, True, {}),
        (13, 32, 32, True, {}),
        (16, 128, 256, True, {"block_n": 128}),
    ]

    for B, size_in, size_out, resnet, extra in configs:
        x = jax.random.normal(
            jax.random.fold_in(kx, 7919 * size_in + 131 * size_out + B),
            (B, size_in), jnp.float32)
        w, b, w_skip = _init_params(
            jax.random.fold_in(kp, 31 * size_in + size_out), size_in, size_out)
        ref = ref_forward(x, w, b, w_skip, resnet)

        # bf16 MXU operands (default) with loose tolerance; explicit f32 with
        # tight tolerance.
        for cdt, atol, rtol in ((jnp.bfloat16, 5e-2, 5e-2),
                                (jnp.float32, 1e-4, 1e-4)):
            out = residue_module_dense(x, w, b, weight_skip=w_skip,
                                       resnet=resnet, compute_dtype=cdt,
                                       **extra)
            out = jax.block_until_ready(out)
            if out.shape != (B, size_out) or not jnp.allclose(out, ref,
                                                              atol=atol,
                                                              rtol=rtol):
                ok = False
                print(f"MISMATCH B={B} in={size_in} out={size_out} "
                      f"resnet={resnet} dtype={jnp.dtype(cdt).name} "
                      f"max_err={float(jnp.max(jnp.abs(out - ref)))}")

    if ok:
        print("KERNEL_OK")
</pallas_src>

<mosaic_0001>
module attributes {stable_mosaic.version = 11 : i64} {
  func.func @_linear_relu_kernel_1k(%arg0: i32, %arg1: i32, %arg2: i32, %arg3: memref<16x128xbf16, #tpu.memory_space<vmem>>, %arg4: memref<128x128xbf16, #tpu.memory_space<vmem>>, %arg5: memref<1x128xf32, #tpu.memory_space<vmem>>, %arg6: memref<16x128xf32, #tpu.memory_space<vmem>>) attributes {dimension_semantics = [#tpu.dimension_semantics<parallel>, #tpu.dimension_semantics<parallel>, #tpu.dimension_semantics<arbitrary>], iteration_bounds = array<i64: 1, 1, 1>, scalar_prefetch = 0 : i64, scratch_operands = 0 : i64, tpu.core_type = #tpu.core_type<tc>, window_params = [{transform_indices = @transform_0, window_bounds = array<i64: 16, 128>}, {transform_indices = @transform_1, window_bounds = array<i64: 128, 128>}, {transform_indices = @transform_2, window_bounds = array<i64: 1, 128>}, {transform_indices = @transform_3, window_bounds = array<i64: 16, 128>}]} {
    %c0 = arith.constant 0 : index
    %c0_0 = arith.constant 0 : index
    %0 = vector.load %arg3[%c0, %c0_0] : memref<16x128xbf16, #tpu.memory_space<vmem>>, vector<16x128xbf16>
    %c0_1 = arith.constant 0 : index
    %c0_2 = arith.constant 0 : index
    %1 = vector.load %arg4[%c0_1, %c0_2] : memref<128x128xbf16, #tpu.memory_space<vmem>>, vector<128x128xbf16>
    %cst = arith.constant dense<0.000000e+00> : vector<16x128xf32>
    %2 = tpu.matmul %0, %1, %cst {dimension_numbers = #tpu.dot_dimension_numbers<[1], [0], [0], [1], [0, 0, 1, 1], [], []>} : vector<16x128xbf16>, vector<128x128xbf16>, vector<16x128xf32> -> vector<16x128xf32>
    %c0_3 = arith.constant 0 : index
    %c0_4 = arith.constant 0 : index
    %3 = vector.load %arg5[%c0_3, %c0_4] : memref<1x128xf32, #tpu.memory_space<vmem>>, vector<1x128xf32>
    %4 = vector.broadcast %3 : vector<1x128xf32> to vector<16x128xf32>
    %5 = arith.addf %2, %4 : vector<16x128xf32>
    %cst_5 = arith.constant 0.000000e+00 : f32
    %6 = vector.broadcast %cst_5 : f32 to vector<16x128xf32>
    %7 = arith.maximumf %5, %6 : vector<16x128xf32>
    %c0_6 = arith.constant 0 : index
    %c0_7 = arith.constant 0 : index
    %8 = vector.load %arg6[%c0_6, %c0_7] : memref<16x128xf32, #tpu.memory_space<vmem>>, vector<16x128xf32>
    tpu.vector_store %arg6[%c0_6, %c0_7], %7 {strides = array<i32>} : memref<16x128xf32, #tpu.memory_space<vmem>>, vector<16x128xf32>,
    return
  }
  func.func @transform_0(%arg0: i32, %arg1: i32, %arg2: i32) -> (i32, i32) {
    %c0_i32 = arith.constant 0 : i32
    return %arg0, %arg2 : i32, i32
  }
  func.func @transform_1(%arg0: i32, %arg1: i32, %arg2: i32) -> (i32, i32) {
    %c0_i32 = arith.constant 0 : i32
    return %arg2, %arg1 : i32, i32
  }
  func.func @transform_2(%arg0: i32, %arg1: i32, %arg2: i32) -> (i32, i32) {
    %c0_i32 = arith.constant 0 : i32
    %c0_i32_0 = arith.constant 0 : i32
    return %c0_i32, %arg1 : i32, i32
  }
  func.func @transform_3(%arg0: i32, %arg1: i32, %arg2: i32) -> (i32, i32) {
    %c0_i32 = arith.constant 0 : i32
    return %arg0, %arg1 : i32, i32
  }
}

</mosaic_0001>

<llo_original>
// kernel: tpu_custom_call.1
$region0: #{tpu_custom_call.1}
  #allocation0 [shape = 'u32[]', space=smem, size = 0x4, offset = 0x4, fixed_abs, tag = 'smem constant byte address 0x4 - core index']
  #allocation1 [shape = 'u32[144,128]{1,0:T(1,128)}', space=vmem, size = 0x12000, scoped, tag = 'internal scratch']
  %s0 = inlined_call_operand.hbm [shape: bf16[16,128], index: 0, kind: input, shape index: {}]
  %s1 = inlined_call_operand.hbm [shape: bf16[128,128], index: 1, kind: input, shape index: {}]
  %s2 = inlined_call_operand.vmem [shape: f32[1,128], index: 2, kind: input, shape index: {}]
  %s3 = inlined_call_operand.hbm [shape: f32[16,128], index: 3, kind: output, shape index: {}]
  %s4 = sld [smem:[#allocation0]]
  $region30: #{tpu_custom_call.1} parent=0
    _
  %s6 = ssub.s32 1, %s4
  %s7 = scalar_select 0, %s6, %s4
  $region1: #{tpu_custom_call.1} parent=0
    #allocation2 [shape = 'u8[4096]{0}', space=vmem, size = 0x1000, scoped, tag = 'input window, operand 0, single buffered']
    #allocation3 [shape = 's32[1]{0}', space=sflag, size = 0x4, scoped, tag = 'scoped memory for tpu_custom_call.1']
    #allocation4 [shape = 's32[1]{0}', space=sflag, size = 0x4, scoped, tag = 'scoped memory for tpu_custom_call.1']
    #allocation5 [shape = 'u8[32768]{0}', space=vmem, size = 0x8000, scoped, tag = 'input window, operand 1, single buffered']
    #allocation6 [shape = 's32[1]{0}', space=sflag, size = 0x4, scoped, tag = 'scoped memory for tpu_custom_call.1']
    #allocation7 [shape = 'u8[8192]{0}', space=vmem, size = 0x2000, scoped, tag = 'output window, operand 0, single buffered']
    %8 = vsyncpa [#allocation3], 0
    %9 = vsyncpa [#allocation6], 0
    %10 = vsyncpa [#allocation4], 0
    // Predicated region
    $region2: #{tpu_custom_call.1} parent=1 // pred_check
      _
    $region3: #{tpu_custom_call.1} parent=1 // pred_check_branch
      %12 = sbr.rel (0) target = $region5
    $region4: #{tpu_custom_call.1} parent=1 // pred_region
      %s14 = ssub.s32 128, 128
      %15 = vsyncadd [#allocation3], %s14
      %s16 = sshll.u32 [#allocation2], 4
      %s17 = int_to_ptr.vmem [resolvable:$true] %s16
      %22 = dma.hbm_to_vmem [thread:$0]  %s0, 128, %s17, [#allocation3], 64, 64, 4
    $region5: #{tpu_custom_call.1} parent=1 // pred_fallthru
      _
    // Predicated region
    $region6: #{tpu_custom_call.1} parent=1 // pred_check
      _
    $region7: #{tpu_custom_call.1} parent=1 // pred_check_branch
      %24 = sbr.rel (0) target = $region9
    $region8: #{tpu_custom_call.1} parent=1 // pred_region
      %s26 = ssub.s32 1024, 1024
      %27 = vsyncadd [#allocation6], %s26
      %s28 = sshll.u32 [#allocation5], 4
      %s29 = int_to_ptr.vmem [resolvable:$true] %s28
      %34 = dma.hbm_to_vmem [thread:$0]  %s1, 1024, %s29, [#allocation6], 64, 64, 4
    $region9: #{tpu_custom_call.1} parent=1 // pred_fallthru
      _
    // Predicated region
    $region10: #{tpu_custom_call.1} parent=1 // pred_check
      _
    $region11: #{tpu_custom_call.1} parent=1 // pred_check_branch
      %36 = sbr.rel (0) target = $region13
    $region12: #{tpu_custom_call.1} parent=1 // pred_region
      _
    $region13: #{tpu_custom_call.1} parent=1 // pred_fallthru
      _
    // Predicated region
    $region14: #{tpu_custom_call.1} parent=1 // pred_check
      _
    $region15: #{tpu_custom_call.1} parent=1 // pred_check_branch
      %38 = sbr.rel (0) target = $region17
    $region16: #{tpu_custom_call.1} parent=1 // pred_region
      %39 = dma.done [#allocation3], 128
    $region17: #{tpu_custom_call.1} parent=1 // pred_fallthru
      _
    // Predicated region
    $region18: #{tpu_custom_call.1} parent=1 // pred_check
      _
    $region19: #{tpu_custom_call.1} parent=1 // pred_check_branch
      %41 = sbr.rel (0) target = $region21
    $region20: #{tpu_custom_call.1} parent=1 // pred_region
      %42 = dma.done [#allocation6], 1024
    $region21: #{tpu_custom_call.1} parent=1 // pred_fallthru
      _
    %v44 = vld [vmem:[#allocation2] sm:$0xf]
    %v45 = vld [vmem:[#allocation2 + $0x4] sm:$0xf]
    %v46 = vld [vmem:[#allocation5] sm:$0xf]
    %v47 = vld [vmem:[#allocation5 + $0x4] sm:$0xf]
    %v48 = vld [vmem:[#allocation5 + $0x8] sm:$0xf]
    %v49 = vld [vmem:[#allocation5 + $0xc] sm:$0xf]
    %v50 = vld [vmem:[#allocation5 + $0x10] sm:$0xf]
    %v51 = vld [vmem:[#allocation5 + $0x14] sm:$0xf]
    %v52 = vld [vmem:[#allocation5 + $0x18] sm:$0xf]
    %v53 = vld [vmem:[#allocation5 + $0x1c] sm:$0xf]
    %v54 = vld [vmem:[#allocation5 + $0x20] sm:$0xf]
    %v55 = vld [vmem:[#allocation5 + $0x24] sm:$0xf]
    %v56 = vld [vmem:[#allocation5 + $0x28] sm:$0xf]
    %v57 = vld [vmem:[#allocation5 + $0x2c] sm:$0xf]
    %v58 = vld [vmem:[#allocation5 + $0x30] sm:$0xf]
    %v59 = vld [vmem:[#allocation5 + $0x34] sm:$0xf]
    %v60 = vld [vmem:[#allocation5 + $0x38] sm:$0xf]
    %v61 = vld [vmem:[#allocation5 + $0x3c] sm:$0xf]
    %v62 = vld [vmem:[%s2] sm:$0x1]
    %v64 = vlaneseq
    %v65 = vshrl.u32 %v64, 7
    %v66 = vsub.s32 0, %v65
    %v67 = vrot.slane %v62, %v66
    %v71 = vunpack.c.l.b16 %v44
    %v72 = vunpack.c.l.b16 %v45
    %v73 = vpack.c.b16 %v72, %v71
    %v91 = vunpack.c.l.b16 %v46
    %v92 = vunpack.c.l.b16 %v47
    %v93 = vunpack.c.l.b16 %v48
    %v94 = vunpack.c.l.b16 %v49
    %v95 = vunpack.c.l.b16 %v50
    %v96 = vunpack.c.l.b16 %v51
    %v97 = vunpack.c.l.b16 %v52
    %v98 = vunpack.c.l.b16 %v53
    %v99 = vunpack.c.l.b16 %v54
    %v100 = vunpack.c.l.b16 %v55
    %v101 = vunpack.c.l.b16 %v56
    %v102 = vunpack.c.l.b16 %v57
    %v103 = vunpack.c.l.b16 %v58
    %v104 = vunpack.c.l.b16 %v59
    %v105 = vunpack.c.l.b16 %v60
    %v106 = vunpack.c.l.b16 %v61
    %v107 = vpack.c.b16 %v92, %v91
    %v108 = vpack.c.b16 %v94, %v93
    %v109 = vpack.c.b16 %v96, %v95
    %v110 = vpack.c.b16 %v98, %v97
    %v111 = vpack.c.b16 %v100, %v99
    %v112 = vpack.c.b16 %v102, %v101
    %v113 = vpack.c.b16 %v104, %v103
    %v114 = vpack.c.b16 %v106, %v105
    %123 = vmatprep.subr.bf16.mxu0 0
    %124 = vmatpush1.bf16.msra.mxu0 %v107
    %125 = vmatprep.subr.bf16.mxu0 0
    %126 = vmatpush1.bf16.msra.mxu0 %v108
    %127 = vmatprep.subr.bf16.mxu0 0
    %128 = vmatpush1.bf16.msra.mxu0 %v109
    %129 = vmatprep.subr.bf16.mxu0 0
    %130 = vmatpush1.bf16.msra.mxu0 %v110
    %131 = vmatprep.subr.bf16.mxu0 0
    %132 = vmatpush1.bf16.msra.mxu0 %v111
    %133 = vmatprep.subr.bf16.mxu0 0
    %134 = vmatpush1.bf16.msra.mxu0 %v112
    %135 = vmatprep.subr.bf16.mxu0 0
    %136 = vmatpush1.bf16.msra.mxu0 %v113
    %137 = vmatprep.subr.bf16.mxu0 0
    %138 = vmatpush1.bf16.msra.mxu0 %v114
    %139 = vmatprep.subr.bf16.mxu0 0
    %140 = vmatpush1.bf16.msra.mxu0 0
    %141 = vmatprep.subr.bf16.mxu0 0
    %142 = vmatpush1.bf16.msra.mxu0 0
    %143 = vmatprep.subr.bf16.mxu0 0
    %144 = vmatpush1.bf16.msra.mxu0 0
    %145 = vmatprep.subr.bf16.mxu0 0
    %146 = vmatpush1.bf16.msra.mxu0 0
    %147 = vmatprep.subr.bf16.mxu0 0
    %148 = vmatpush1.bf16.msra.mxu0 0
    %149 = vmatprep.subr.bf16.mxu0 0
    %150 = vmatpush1.bf16.msra.mxu0 0
    %151 = vmatprep.subr.bf16.mxu0 0
    %152 = vmatpush1.bf16.msra.mxu0 0
    %153 = vmatprep.subr.bf16.mxu0 0
    %154 = vmatpush1.bf16.msra.mxu0 0
    %155 = vmatprep.mubr.bf16.mxu0 0
    %156 = vmatmul.mubr.bf16.gmra.mrb[0].mxu0 %v73
    %v157 = vpop.f32.mrb[0].mxu0
    %v158 = vadd.f32 %v67, %v157
    %v159 = vpop.f32.mrb[0].mxu0
    %v160 = vpop.f32.mrb[0].mxu0
    %v161 = vadd.f32 %v67, %v160
    %v162 = vpop.f32.mrb[0].mxu0
    %163 = vdwg.mxu0
    %v164 = vmax.f32 %v158, 0.0
    %v165 = vmax.f32 %v161, 0.0
    %166 = vst [vmem:[#allocation7] sm:$0xff] %v164
    %167 = vst [vmem:[#allocation7 + $0x8] sm:$0xff] %v165
    // Predicated region
    $region22: #{tpu_custom_call.1} parent=1 // pred_check
      _
    $region23: #{tpu_custom_call.1} parent=1 // pred_check_branch
      %169 = sbr.rel (0) target = $region25
    $region24: #{tpu_custom_call.1} parent=1 // pred_region
      %s171 = ssub.s32 256, 256
      %172 = vsyncadd [#allocation4], %s171
      %s173 = sshll.u32 [#allocation7], 4
      %s174 = int_to_ptr.vmem [resolvable:$true] %s173
      %179 = dma.vmem_to_hbm [thread:$0]  %s174, 256, %s3, [#allocation4], 128, 128, 8
    $region25: #{tpu_custom_call.1} parent=1 // pred_fallthru
      _
    // Predicated region
    $region26: #{tpu_custom_call.1} parent=1 // pred_check
      _
    $region27: #{tpu_custom_call.1} parent=1 // pred_check_branch
      %181 = sbr.rel (0) target = $region29
    $region28: #{tpu_custom_call.1} parent=1 // pred_region
      %182 = dma.done [#allocation4], 256
    $region29: #{tpu_custom_call.1} parent=1 // pred_fallthru
      _
    %183 = vsyncpa [#allocation3], 1
    %184 = vsyncpa [#allocation6], 1
    %185 = vsyncpa [#allocation4], 1

</llo_original>
